<compile_context>
chip_gen: v6e
topology: v6e:2x2x1
jax: 0.10.0
libtpu: 0.0.40
codegen_flags: <defaults>
</compile_context>

<pallas_src>
import numpy as np
import jax
import jax.numpy as jnp
from jax import lax
from jax.experimental import pallas as pl
from jax.experimental.pallas import tpu as pltpu

NODE_DIM = 32
EDGE_DIM = 16
IN_DIM = NODE_DIM + EDGE_DIM      # 48: concat folded into a single K=48 matmul
HIDDEN_DIM = 64
OUT_DIM = 32
MAX_TILE_ROWS = 4096              # row tile upper bound (multiple of 128)


def _cdiv(a, b):
    return -(-a // b)


def _choose_tiling(n_edges):
    """Static (trace-time) tile/padding choice.

    - quantum of 128 rows; e_pad = n_tiles * tile_r with waste < n_tiles blocks
    - tile_r <= MAX_TILE_ROWS
    - at least 2 tiles whenever there are >= 2 blocks (v7x megacore split)
    """
    q_blk = _cdiv(max(int(n_edges), 1), 128)
    max_blk = MAX_TILE_ROWS // 128
    min_tiles = 2 if q_blk >= 2 else 1
    n_tiles = max(min_tiles, _cdiv(q_blk, max_blk))
    tile_blk = _cdiv(q_blk, n_tiles)
    tile_r = tile_blk * 128
    e_pad = n_tiles * tile_r
    return e_pad, tile_r


# ----------------------------- Pallas kernel ---------------------------------
def _fused_flow_mlp_kernel(feat_ref, dcol_ref, w1_ref, b1_ref, w2_ref, b2_ref,
                           out_ref):
    """One grid step = one row tile of edges (both flow branches at once).

    feat: (tile_r, 48) bf16     shared per-edge features cat([x[col], edge_attr])
    dcol: (tile_r, 1) int32     col - row  (0 for padded rows)
    W1:   (48, 128) bf16        [W1_out | W1_in]
    W2:   (128, 64) bf16        block-diag(W2_out, W2_in)
    out:  (tile_r, 64) bf16     [flow_out | flow_in], gated per branch.
    """
    feat = feat_ref[...]                                            # bf16
    h = jnp.dot(feat, w1_ref[...],
                preferred_element_type=jnp.float32) + b1_ref[...]   # (tile_r,128) f32
    h = jnp.maximum(h, 0.0).astype(jnp.bfloat16)
    o = jnp.dot(h, w2_ref[...],
                preferred_element_type=jnp.float32) + b2_ref[...]   # (tile_r,64) f32
    o = jnp.maximum(o, 0.0)

    dcol = dcol_ref[...]                                            # (tile_r, 1)
    m_out = (dcol > 0).astype(jnp.float32)                          # flow_out rows
    m_in = (dcol < 0).astype(jnp.float32)                           # flow_in rows
    lane = lax.broadcasted_iota(jnp.int32, o.shape, 1)              # (tile_r, 64)
    gate = jnp.where(lane < OUT_DIM,
                     jnp.broadcast_to(m_out, o.shape),
                     jnp.broadcast_to(m_in, o.shape))
    out_ref[...] = (o * gate).astype(out_ref.dtype)


def _fused_flow_mlp(feat, dcol, w1c, b1c, w2bd, b2c, tile_r):
    e_pad = feat.shape[0]
    n_tiles = e_pad // tile_r
    return pl.pallas_call(
        _fused_flow_mlp_kernel,
        out_shape=jax.ShapeDtypeStruct((e_pad, 2 * OUT_DIM), jnp.bfloat16),
        grid=(n_tiles,),
        in_specs=[
            pl.BlockSpec((tile_r, IN_DIM), lambda i: (i, 0)),
            pl.BlockSpec((tile_r, 1), lambda i: (i, 0)),
            pl.BlockSpec((IN_DIM, 2 * HIDDEN_DIM), lambda i: (0, 0)),
            pl.BlockSpec((1, 2 * HIDDEN_DIM), lambda i: (0, 0)),
            pl.BlockSpec((2 * HIDDEN_DIM, 2 * OUT_DIM), lambda i: (0, 0)),
            pl.BlockSpec((1, 2 * OUT_DIM), lambda i: (0, 0)),
        ],
        out_specs=pl.BlockSpec((tile_r, 2 * OUT_DIM), lambda i: (i, 0)),
        compiler_params=pltpu.CompilerParams(
            dimension_semantics=("parallel",)),
    )(feat, dcol, w1c, b1c, w2bd, b2c)


# ------------------------------ glue / model ---------------------------------
@jax.jit
def _forward_impl(x, edge_index, edge_attr, flow_in_params, flow_out_params):
    row, col = edge_index[0], edge_index[1]
    n_edges = edge_attr.shape[0]
    e_pad, tile_r = _choose_tiling(n_edges)

    # Single per-edge gather in ORIGINAL edge order (shared by both branches).
    # TODO(synk): the gather could move in-kernel (x resident in VMEM + scalar-
    # prefetched col indices) to drop the HBM round-trip of this 96 B/edge slab.
    feat = jnp.concatenate([x[col], edge_attr], axis=1).astype(jnp.bfloat16)
    feat = jnp.pad(feat, ((0, e_pad - n_edges), (0, 0)))

    # sign(col - row): >0 -> flow_out edge, <0 -> flow_in edge, 0 -> neither
    # (also used for the zero-padded rows).
    dcol = (col - row).astype(jnp.int32)[:, None]
    dcol = jnp.pad(dcol, ((0, e_pad - n_edges), (0, 0)))

    fo, fi = flow_out_params, flow_in_params
    w1c = jnp.concatenate([fo[0], fi[0]], axis=1).astype(jnp.bfloat16)   # (48,128)
    b1c = jnp.concatenate([fo[1], fi[1]], axis=1)                        # (1,128) f32
    z = jnp.zeros((HIDDEN_DIM, OUT_DIM), jnp.float32)
    w2bd = jnp.concatenate(
        [jnp.concatenate([fo[2], z], axis=1),
         jnp.concatenate([z, fi[2]], axis=1)], axis=0).astype(jnp.bfloat16)  # (128,64)
    b2c = jnp.concatenate([fo[3], fi[3]], axis=1)                        # (1,64) f32

    out = _fused_flow_mlp(feat, dcol, w1c, b1c, w2bd, b2c, tile_r)       # (e_pad,64)
    flow_out = out[:, :OUT_DIM]
    flow_in = out[:, OUT_DIM:]
    mask_out = dcol[:, 0] > 0
    mask_in = dcol[:, 0] < 0
    return flow_out, flow_in, mask_out, mask_in


def time_aware_node_model_forward(x, edge_index, edge_attr,
                                  flow_in_params, flow_out_params):
    """Shape-static equivalent of TimeAwareNodeModel.forward.

    Torch returns variable-length compacted tensors; here flow_out / flow_in are
    returned per edge in original edge order (rows of edges not in the branch,
    and padded rows, are exactly 0), with boolean masks marking valid rows.
    """
    flow_out, flow_in, m_out, m_in = _forward_impl(
        x, edge_index, edge_attr, flow_in_params, flow_out_params)
    # TODO(synk): node_mlp / node_agg_fn are stored by the module but unused in
    # this forward (applied later in the full MPN), so they are not modeled.
    return {'flow_out': flow_out, 'flow_in': flow_in,
            'flow_out_mask': m_out, 'flow_in_mask': m_in,
            'x_size0': x.shape[0]}


def init_mlp_params(key):
    """Synthetic 2-layer MLP params (Linear-ReLU-Linear-ReLU), f32 master copy.
    W1 is a single (48, 64) matrix so the concat is folded into one K=48 matmul."""
    k1, k2, k3, k4 = jax.random.split(key, 4)
    s1 = 1.0 / np.sqrt(IN_DIM)
    s2 = 1.0 / np.sqrt(HIDDEN_DIM)
    w1 = jax.random.normal(k1, (IN_DIM, HIDDEN_DIM), jnp.float32) * s1
    b1 = jax.random.normal(k3, (1, HIDDEN_DIM), jnp.float32) * 0.01
    w2 = jax.random.normal(k4, (HIDDEN_DIM, OUT_DIM), jnp.float32) * s2
    b2 = jnp.zeros((1, OUT_DIM), jnp.float32)
    return (w1, b1, w2, b2)


def mlp_reference(inp_f32, params):
    """Plain-JAX reference matching the kernel's precision policy
    (bf16 MXU inputs, f32 accumulation, f32 bias/ReLU, f32 final output)."""
    w1, b1, w2, b2 = params
    inp = inp_f32.astype(jnp.bfloat16)
    h = jnp.dot(inp, w1.astype(jnp.bfloat16),
                preferred_element_type=jnp.float32) + b1
    h = jnp.maximum(h, 0.0).astype(jnp.bfloat16)
    o = jnp.dot(h, w2.astype(jnp.bfloat16),
                preferred_element_type=jnp.float32) + b2
    return jnp.maximum(o, 0.0)


# ----------------------------------- main -------------------------------------
if __name__ == "__main__":
    key = jax.random.PRNGKey(0)
    k_x, k_e, k_ei, k_pin, k_pout = jax.random.split(key, 5)

    N_NODES = 16
    N_EDGES = 64

    x = jax.random.normal(k_x, (N_NODES, NODE_DIM), jnp.float32)
    edge_attr = jax.random.normal(k_e, (N_EDGES, EDGE_DIM), jnp.float32)
    edge_index = jax.random.randint(k_ei, (2, N_EDGES), 0, N_NODES,
                                    dtype=jnp.int32)

    flow_in_params = init_mlp_params(k_pin)
    flow_out_params = init_mlp_params(k_pout)

    out = time_aware_node_model_forward(x, edge_index, edge_attr,
                                        flow_in_params, flow_out_params)
    jax.block_until_ready(out['flow_out'])
    jax.block_until_ready(out['flow_in'])

    # ------------------------ correctness check (host) ------------------------
    ei = np.asarray(edge_index)
    row, col = ei[0], ei[1]
    m_out = row < col
    m_in = row > col

    feat_np = np.concatenate([np.asarray(x)[col], np.asarray(edge_attr)], axis=1)
    ref_out = np.asarray(mlp_reference(jnp.asarray(feat_np[m_out]),
                                       flow_out_params))
    ref_in = np.asarray(mlp_reference(jnp.asarray(feat_np[m_in]),
                                      flow_in_params))

    got_out = np.asarray(out['flow_out'].astype(jnp.float32))
    got_in = np.asarray(out['flow_in'].astype(jnp.float32))
    kern_m_out = np.asarray(out['flow_out_mask'])
    kern_m_in = np.asarray(out['flow_in_mask'])

    assert out['x_size0'] == N_NODES
    assert np.array_equal(kern_m_out[:N_EDGES], m_out)
    assert np.array_equal(kern_m_in[:N_EDGES], m_in)
    # rows outside a branch and padded rows must be exactly zero
    assert np.all(got_out[:N_EDGES][~m_out] == 0.0)
    assert np.all(got_in[:N_EDGES][~m_in] == 0.0)
    assert np.all(got_out[N_EDGES:] == 0.0)
    assert np.all(got_in[N_EDGES:] == 0.0)
    # valid rows (original edge order) match the per-branch MLP reference
    np.testing.assert_allclose(got_out[:N_EDGES][m_out], ref_out,
                               rtol=1e-2, atol=1e-2)
    np.testing.assert_allclose(got_in[:N_EDGES][m_in], ref_in,
                               rtol=1e-2, atol=1e-2)

    print("KERNEL_OK")
</pallas_src>

<mosaic_0001>
module attributes {stable_mosaic.version = 11 : i64} {
  func.func @_fused_flow_mlp_kernel(%arg0: i32, %arg1: memref<128x48xbf16, #tpu.memory_space<vmem>>, %arg2: memref<128x1xi32, #tpu.memory_space<vmem>>, %arg3: memref<48x128xbf16, #tpu.memory_space<vmem>>, %arg4: memref<1x128xf32, #tpu.memory_space<vmem>>, %arg5: memref<128x64xbf16, #tpu.memory_space<vmem>>, %arg6: memref<1x64xf32, #tpu.memory_space<vmem>>, %arg7: memref<128x64xbf16, #tpu.memory_space<vmem>>) attributes {dimension_semantics = [#tpu.dimension_semantics<parallel>], iteration_bounds = array<i64: 1>, scalar_prefetch = 0 : i64, scratch_operands = 0 : i64, tpu.core_type = #tpu.core_type<tc>, window_params = [{transform_indices = @transform_0, window_bounds = array<i64: 128, 48>}, {transform_indices = @transform_1, window_bounds = array<i64: 128, 1>}, {pipeline_mode = #tpu.pipeline_mode<synchronous>, transform_indices = @transform_2, window_bounds = array<i64: 48, 128>}, {pipeline_mode = #tpu.pipeline_mode<synchronous>, transform_indices = @transform_3, window_bounds = array<i64: 1, 128>}, {pipeline_mode = #tpu.pipeline_mode<synchronous>, transform_indices = @transform_4, window_bounds = array<i64: 128, 64>}, {pipeline_mode = #tpu.pipeline_mode<synchronous>, transform_indices = @transform_5, window_bounds = array<i64: 1, 64>}, {transform_indices = @transform_6, window_bounds = array<i64: 128, 64>}]} {
    %c0 = arith.constant 0 : index
    %c0_0 = arith.constant 0 : index
    %0 = vector.load %arg1[%c0, %c0_0] : memref<128x48xbf16, #tpu.memory_space<vmem>>, vector<128x48xbf16>
    %c0_1 = arith.constant 0 : index
    %c0_2 = arith.constant 0 : index
    %1 = vector.load %arg3[%c0_1, %c0_2] : memref<48x128xbf16, #tpu.memory_space<vmem>>, vector<48x128xbf16>
    %cst = arith.constant dense<0.000000e+00> : vector<128x128xf32>
    %2 = tpu.matmul %0, %1, %cst {dimension_numbers = #tpu.dot_dimension_numbers<[1], [0], [0], [1], [0, 0, 1, 1], [], []>} : vector<128x48xbf16>, vector<48x128xbf16>, vector<128x128xf32> -> vector<128x128xf32>
    %c0_3 = arith.constant 0 : index
    %c0_4 = arith.constant 0 : index
    %3 = vector.load %arg4[%c0_3, %c0_4] : memref<1x128xf32, #tpu.memory_space<vmem>>, vector<1x128xf32>
    %4 = vector.broadcast %3 : vector<1x128xf32> to vector<128x128xf32>
    %5 = arith.addf %2, %4 : vector<128x128xf32>
    %cst_5 = arith.constant 0.000000e+00 : f32
    %6 = vector.broadcast %cst_5 : f32 to vector<128x128xf32>
    %7 = arith.maximumf %5, %6 : vector<128x128xf32>
    %8 = arith.truncf %7 : vector<128x128xf32> to vector<128x128xbf16>
    %c0_6 = arith.constant 0 : index
    %c0_7 = arith.constant 0 : index
    %9 = vector.load %arg5[%c0_6, %c0_7] : memref<128x64xbf16, #tpu.memory_space<vmem>>, vector<128x64xbf16>
    %cst_8 = arith.constant dense<0.000000e+00> : vector<128x64xf32>
    %10 = tpu.matmul %8, %9, %cst_8 {dimension_numbers = #tpu.dot_dimension_numbers<[1], [0], [0], [1], [0, 0, 1, 1], [], []>} : vector<128x128xbf16>, vector<128x64xbf16>, vector<128x64xf32> -> vector<128x64xf32>
    %c0_9 = arith.constant 0 : index
    %c0_10 = arith.constant 0 : index
    %11 = vector.load %arg6[%c0_9, %c0_10] : memref<1x64xf32, #tpu.memory_space<vmem>>, vector<1x64xf32>
    %12 = vector.broadcast %11 : vector<1x64xf32> to vector<128x64xf32>
    %13 = arith.addf %10, %12 : vector<128x64xf32>
    %cst_11 = arith.constant 0.000000e+00 : f32
    %14 = vector.broadcast %cst_11 : f32 to vector<128x64xf32>
    %15 = arith.maximumf %13, %14 : vector<128x64xf32>
    %c0_12 = arith.constant 0 : index
    %c0_13 = arith.constant 0 : index
    %16 = vector.load %arg2[%c0_12, %c0_13] : memref<128x1xi32, #tpu.memory_space<vmem>>, vector<128x1xi32>
    %c0_i32 = arith.constant 0 : i32
    %17 = vector.broadcast %c0_i32 : i32 to vector<128x1xi32>
    %18 = arith.cmpi sgt, %16, %17 : vector<128x1xi32>
    %19 = arith.extui %18 : vector<128x1xi1> to vector<128x1xi32>
    %20 = arith.sitofp %19 : vector<128x1xi32> to vector<128x1xf32>
    %c0_i32_14 = arith.constant 0 : i32
    %21 = vector.broadcast %c0_i32_14 : i32 to vector<128x1xi32>
    %22 = arith.cmpi slt, %16, %21 : vector<128x1xi32>
    %23 = arith.extui %22 : vector<128x1xi1> to vector<128x1xi32>
    %24 = arith.sitofp %23 : vector<128x1xi32> to vector<128x1xf32>
    %25 = tpu.iota {dimensions = array<i32: 1>} : vector<128x64xi32>
    %c32_i32 = arith.constant 32 : i32
    %26 = vector.broadcast %c32_i32 : i32 to vector<128x64xi32>
    %27 = arith.cmpi slt, %25, %26 : vector<128x64xi32>
    %28 = vector.shape_cast %20 : vector<128x1xf32> to vector<128x1xf32>
    %29 = vector.broadcast %28 : vector<128x1xf32> to vector<128x64xf32>
    %30 = vector.shape_cast %24 : vector<128x1xf32> to vector<128x1xf32>
    %31 = vector.broadcast %30 : vector<128x1xf32> to vector<128x64xf32>
    %32 = arith.select %27, %29, %31 : vector<128x64xi1>, vector<128x64xf32>
    %33 = arith.mulf %15, %32 : vector<128x64xf32>
    %34 = arith.truncf %33 : vector<128x64xf32> to vector<128x64xbf16>
    %c0_15 = arith.constant 0 : index
    %c0_16 = arith.constant 0 : index
    %35 = vector.load %arg7[%c0_15, %c0_16] : memref<128x64xbf16, #tpu.memory_space<vmem>>, vector<128x64xbf16>
    tpu.vector_store %arg7[%c0_15, %c0_16], %34 {strides = array<i32>} : memref<128x64xbf16, #tpu.memory_space<vmem>>, vector<128x64xbf16>,
    return
  }
  func.func @transform_0(%arg0: i32) -> (i32, i32) {
    %c0_i32 = arith.constant 0 : i32
    %c0_i32_0 = arith.constant 0 : i32
    return %arg0, %c0_i32 : i32, i32
  }
  func.func @transform_1(%arg0: i32) -> (i32, i32) {
    %c0_i32 = arith.constant 0 : i32
    %c0_i32_0 = arith.constant 0 : i32
    return %arg0, %c0_i32 : i32, i32
  }
  func.func @transform_2(%arg0: i32) -> (i32, i32) {
    %c0_i32 = arith.constant 0 : i32
    %c0_i32_0 = arith.constant 0 : i32
    %c0_i32_1 = arith.constant 0 : i32
    return %c0_i32, %c0_i32_0 : i32, i32
  }
  func.func @transform_3(%arg0: i32) -> (i32, i32) {
    %c0_i32 = arith.constant 0 : i32
    %c0_i32_0 = arith.constant 0 : i32
    %c0_i32_1 = arith.constant 0 : i32
    return %c0_i32, %c0_i32_0 : i32, i32
  }
  func.func @transform_4(%arg0: i32) -> (i32, i32) {
    %c0_i32 = arith.constant 0 : i32
    %c0_i32_0 = arith.constant 0 : i32
    %c0_i32_1 = arith.constant 0 : i32
    return %c0_i32, %c0_i32_0 : i32, i32
  }
  func.func @transform_5(%arg0: i32) -> (i32, i32) {
    %c0_i32 = arith.constant 0 : i32
    %c0_i32_0 = arith.constant 0 : i32
    %c0_i32_1 = arith.constant 0 : i32
    return %c0_i32, %c0_i32_0 : i32, i32
  }
  func.func @transform_6(%arg0: i32) -> (i32, i32) {
    %c0_i32 = arith.constant 0 : i32
    %c0_i32_0 = arith.constant 0 : i32
    return %arg0, %c0_i32 : i32, i32
  }
}

</mosaic_0001>

<llo_original>
// kernel: _forward_impl.1
$region0: #{_forward_impl.1}
  #allocation0 [shape = 'u32[]', space=smem, size = 0x4, offset = 0x4, fixed_abs, tag = 'smem constant byte address 0x4 - core index']
  #allocation1 [shape = 'u32[144,128]{1,0:T(1,128)}', space=vmem, size = 0x12000, scoped, tag = 'internal scratch']
  %s0 = inlined_call_operand.vmem [shape: bf16[128,48], index: 0, kind: input, shape index: {}]
  %s1 = inlined_call_operand.vmem [shape: s32[128,1], index: 1, kind: input, shape index: {}]
  %s2 = inlined_call_operand.vmem [shape: bf16[48,128], index: 2, kind: input, shape index: {}]
  %s3 = inlined_call_operand.vmem [shape: f32[1,128], index: 3, kind: input, shape index: {}]
  %s4 = inlined_call_operand.vmem [shape: bf16[128,64], index: 4, kind: input, shape index: {}]
  %s5 = inlined_call_operand.vmem [shape: f32[1,64], index: 5, kind: input, shape index: {}]
  %s6 = inlined_call_operand.vmem [shape: bf16[128,64], index: 6, kind: output, shape index: {}]
  %s7 = sld [smem:[#allocation0]]
  $region34: #{_forward_impl.1} parent=0
    _
  %s9 = ssub.s32 1, %s7
  %s10 = scalar_select 0, %s9, %s7
  // Predicated region
  $region2: #{_forward_impl.1} parent=0 // pred_check
    _
  $region3: #{_forward_impl.1} parent=0 // pred_check_branch
    %12 = sbr.rel (0) target = $region5
  $region4: #{_forward_impl.1} parent=0 // pred_region
    _
  $region5: #{_forward_impl.1} parent=0 // pred_fallthru
    _
  // Predicated region
  $region6: #{_forward_impl.1} parent=0 // pred_check
    _
  $region7: #{_forward_impl.1} parent=0 // pred_check_branch
    %14 = sbr.rel (0) target = $region9
  $region8: #{_forward_impl.1} parent=0 // pred_region
    _
  $region9: #{_forward_impl.1} parent=0 // pred_fallthru
    _
  // Predicated region
  $region10: #{_forward_impl.1} parent=0 // pred_check
    _
  $region11: #{_forward_impl.1} parent=0 // pred_check_branch
    %16 = sbr.rel (0) target = $region13
  $region12: #{_forward_impl.1} parent=0 // pred_region
    _
  $region13: #{_forward_impl.1} parent=0 // pred_fallthru
    _
  // Predicated region
  $region14: #{_forward_impl.1} parent=0 // pred_check
    _
  $region15: #{_forward_impl.1} parent=0 // pred_check_branch
    %18 = sbr.rel (0) target = $region17
  $region16: #{_forward_impl.1} parent=0 // pred_region
    _
  $region17: #{_forward_impl.1} parent=0 // pred_fallthru
    _
  // Predicated region
  $region18: #{_forward_impl.1} parent=0 // pred_check
    _
  $region19: #{_forward_impl.1} parent=0 // pred_check_branch
    %20 = sbr.rel (0) target = $region21
  $region20: #{_forward_impl.1} parent=0 // pred_region
    _
  $region21: #{_forward_impl.1} parent=0 // pred_fallthru
    _
  // Predicated region
  $region22: #{_forward_impl.1} parent=0 // pred_check
    _
  $region23: #{_forward_impl.1} parent=0 // pred_check_branch
    %22 = sbr.rel (0) target = $region25
  $region24: #{_forward_impl.1} parent=0 // pred_region
    _
  $region25: #{_forward_impl.1} parent=0 // pred_fallthru
    _
  %v24 = vld [vmem:[%s0] sm:$0xf]
  %v25 = vld [vmem:[%s0 + $0x4] sm:$0xf]
  %v26 = vld [vmem:[%s0 + $0x8] sm:$0xf]
  %v27 = vld [vmem:[%s0 + $0xc] sm:$0xf]
  %v28 = vld [vmem:[%s0 + $0x10] sm:$0xf]
  %v29 = vld [vmem:[%s0 + $0x14] sm:$0xf]
  %v30 = vld [vmem:[%s0 + $0x18] sm:$0xf]
  %v31 = vld [vmem:[%s0 + $0x1c] sm:$0xf]
  %v32 = vld [vmem:[%s0 + $0x20] sm:$0xf]
  %v33 = vld [vmem:[%s0 + $0x24] sm:$0xf]
  %v34 = vld [vmem:[%s0 + $0x28] sm:$0xf]
  %v35 = vld [vmem:[%s0 + $0x2c] sm:$0xf]
  %v36 = vld [vmem:[%s0 + $0x30] sm:$0xf]
  %v37 = vld [vmem:[%s0 + $0x34] sm:$0xf]
  %v38 = vld [vmem:[%s0 + $0x38] sm:$0xf]
  %v39 = vld [vmem:[%s0 + $0x3c] sm:$0xf]
  %v40 = vld [vmem:[%s2] sm:$0xf]
  %v41 = vld [vmem:[%s2 + $0x4] sm:$0xf]
  %v42 = vld [vmem:[%s2 + $0x8] sm:$0xf]
  %v43 = vld [vmem:[%s2 + $0xc] sm:$0xf]
  %v44 = vld [vmem:[%s2 + $0x10] sm:$0xf]
  %v45 = vld [vmem:[%s2 + $0x14] sm:$0xf]
  %v46 = vld [vmem:[%s3] sm:$0x1]
  %v48 = vlaneseq
  %v49 = vshrl.u32 %v48, 7
  %v50 = vsub.s32 0, %v49
  %v51 = vrot.slane %v46, %v50
  %v69 = vunpack.c.l.b16 %v24
  %v70 = vunpack.c.l.b16 %v25
  %v71 = vunpack.c.l.b16 %v26
  %v72 = vunpack.c.l.b16 %v27
  %v73 = vunpack.c.l.b16 %v28
  %v74 = vunpack.c.l.b16 %v29
  %v75 = vunpack.c.l.b16 %v30
  %v76 = vunpack.c.l.b16 %v31
  %v77 = vunpack.c.l.b16 %v32
  %v78 = vunpack.c.l.b16 %v33
  %v79 = vunpack.c.l.b16 %v34
  %v80 = vunpack.c.l.b16 %v35
  %v81 = vunpack.c.l.b16 %v36
  %v82 = vunpack.c.l.b16 %v37
  %v83 = vunpack.c.l.b16 %v38
  %v84 = vunpack.c.l.b16 %v39
  %v85 = vpack.c.b16 %v70, %v69
  %v86 = vpack.c.b16 %v72, %v71
  %v87 = vpack.c.b16 %v74, %v73
  %v88 = vpack.c.b16 %v76, %v75
  %v89 = vpack.c.b16 %v78, %v77
  %v90 = vpack.c.b16 %v80, %v79
  %v91 = vpack.c.b16 %v82, %v81
  %v92 = vpack.c.b16 %v84, %v83
  %v99 = vunpack.c.l.b16 %v40
  %v100 = vunpack.c.l.b16 %v41
  %v101 = vunpack.c.l.b16 %v42
  %v102 = vunpack.c.l.b16 %v43
  %v103 = vunpack.c.l.b16 %v44
  %v104 = vunpack.c.l.b16 %v45
  %v105 = vpack.c.b16 %v100, %v99
  %v106 = vpack.c.b16 %v102, %v101
  %v107 = vpack.c.b16 %v104, %v103
  %vm111 = vcmask 392192
  %v113 = vsel %vm111, %v85, 0
  %v116 = vsel %vm111, %v86, 0
  %v119 = vsel %vm111, %v87, 0
  %v122 = vsel %vm111, %v88, 0
  %v125 = vsel %vm111, %v89, 0
  %v128 = vsel %vm111, %v90, 0
  %v131 = vsel %vm111, %v91, 0
  %v134 = vsel %vm111, %v92, 0
  %136 = vmatprep.subr.bf16.mxu0 0
  %137 = vmatpush1.bf16.msra.mxu0 0
  %138 = vmatprep.subr.bf16.mxu0 0
  %139 = vmatpush1.bf16.msra.mxu0 0
  %140 = vmatprep.subr.bf16.mxu0 0
  %141 = vmatpush1.bf16.msra.mxu0 0
  %142 = vmatprep.subr.bf16.mxu0 0
  %143 = vmatpush1.bf16.msra.mxu0 0
  %144 = vmatprep.subr.bf16.mxu0 0
  %145 = vmatpush1.bf16.msra.mxu0 0
  %146 = vmatprep.subr.bf16.mxu0 0
  %147 = vmatpush1.bf16.msra.mxu0 %v107
  %148 = vmatprep.subr.bf16.mxu0 0
  %149 = vmatpush1.bf16.msra.mxu0 %v106
  %150 = vmatprep.subr.bf16.mxu0 0
  %151 = vmatpush1.bf16.msra.mxu0 %v105
  %152 = vmatprep.subr.bf16.mxu0 0
  %153 = vmatpush2.bf16.msra.mxu0 0
  %154 = vmatprep.subr.bf16.mxu0 0
  %155 = vmatpush2.bf16.msra.mxu0 0
  %156 = vmatprep.subr.bf16.mxu0 0
  %157 = vmatpush2.bf16.msra.mxu0 0
  %158 = vmatprep.subr.bf16.mxu0 0
  %159 = vmatpush2.bf16.msra.mxu0 0
  %160 = vmatprep.subr.bf16.mxu0 0
  %161 = vmatpush2.bf16.msra.mxu0 0
  %162 = vmatprep.subr.bf16.mxu0 0
  %163 = vmatpush2.bf16.msra.mxu0 0
  %164 = vmatprep.subr.bf16.mxu0 0
  %165 = vmatpush2.bf16.msra.mxu0 0
  %166 = vmatprep.subr.bf16.mxu0 0
  %167 = vmatpush2.bf16.msra.mxu0 0
  %168 = vmatprep.mubr.bf16.mxu0 0
  %169 = vmatmul.mubr.bf16.gmra.mxu0 %v113
  %v170 = vpop.f32.mrf.mxu0
  %v171 = vadd.f32 %v51, %v170
  %v172 = vpop.f32.mrf.mxu0
  %v173 = vpop.f32.mrf.mxu0
  %v174 = vadd.f32 %v51, %v173
  %v175 = vpop.f32.mrf.mxu0
  %176 = vmatprep.mubr.bf16.mxu0 0
  %177 = vmatmul.mubr.bf16.gmra.mxu0 %v116
  %v178 = vpop.f32.mrf.mxu0
  %v179 = vadd.f32 %v51, %v178
  %v180 = vpop.f32.mrf.mxu0
  %v181 = vpop.f32.mrf.mxu0
  %v182 = vadd.f32 %v51, %v181
  %v183 = vpop.f32.mrf.mxu0
  %184 = vmatprep.mubr.bf16.mxu0 0
  %185 = vmatmul.mubr.bf16.gmra.mxu0 %v119
  %v186 = vpop.f32.mrf.mxu0
  %v187 = vadd.f32 %v51, %v186
  %v188 = vpop.f32.mrf.mxu0
  %v189 = vpop.f32.mrf.mxu0
  %v190 = vadd.f32 %v51, %v189
  %v191 = vpop.f32.mrf.mxu0
  %192 = vmatprep.mubr.bf16.mxu0 0
  %193 = vmatmul.mubr.bf16.gmra.mxu0 %v122
  %v194 = vpop.f32.mrf.mxu0
  %v195 = vadd.f32 %v51, %v194
  %v196 = vpop.f32.mrf.mxu0
  %v197 = vpop.f32.mrf.mxu0
  %v198 = vadd.f32 %v51, %v197
  %v199 = vpop.f32.mrf.mxu0
  %200 = vmatprep.mubr.bf16.mxu0 0
  %201 = vmatmul.mubr.bf16.gmra.mxu0 %v125
  %v202 = vpop.f32.mrf.mxu0
  %v203 = vadd.f32 %v51, %v202
  %v204 = vpop.f32.mrf.mxu0
  %v205 = vpop.f32.mrf.mxu0
  %v206 = vadd.f32 %v51, %v205
  %v207 = vpop.f32.mrf.mxu0
  %208 = vmatprep.mubr.bf16.mxu0 0
  %209 = vmatmul.mubr.bf16.gmra.mxu0 %v128
  %v210 = vpop.f32.mrf.mxu0
  %v211 = vadd.f32 %v51, %v210
  %v212 = vpop.f32.mrf.mxu0
  %v213 = vpop.f32.mrf.mxu0
  %v214 = vadd.f32 %v51, %v213
  %v215 = vpop.f32.mrf.mxu0
  %216 = vmatprep.mubr.bf16.mxu0 0
  %217 = vmatmul.mubr.bf16.gmra.mxu0 %v131
  %v218 = vpop.f32.mrf.mxu0
  %v219 = vadd.f32 %v51, %v218
  %v220 = vpop.f32.mrf.mxu0
  %v221 = vpop.f32.mrf.mxu0
  %v222 = vadd.f32 %v51, %v221
  %v223 = vpop.f32.mrf.mxu0
  %224 = vmatprep.mubr.bf16.mxu0 0
  %225 = vmatmul.mubr.bf16.gmra.mxu0 %v134
  %v226 = vpop.f32.mrf.mxu0
  %v227 = vadd.f32 %v51, %v226
  %v228 = vpop.f32.mrf.mxu0
  %v229 = vpop.f32.mrf.mxu0
  %v230 = vadd.f32 %v51, %v229
  %v231 = vpop.f32.mrf.mxu0
  %232 = vdwg.mxu0
  %v233 = vmax.f32 %v171, 0.0
  %v234 = vmax.f32 %v174, 0.0
  %v235 = vmax.f32 %v179, 0.0
  %v236 = vmax.f32 %v182, 0.0
  %v237 = vmax.f32 %v187, 0.0
  %v238 = vmax.f32 %v190, 0.0
  %v239 = vmax.f32 %v195, 0.0
  %v240 = vmax.f32 %v198, 0.0
  %v241 = vmax.f32 %v203, 0.0
  %v242 = vmax.f32 %v206, 0.0
  %v243 = vmax.f32 %v211, 0.0
  %v244 = vmax.f32 %v214, 0.0
  %v245 = vmax.f32 %v219, 0.0
  %v246 = vmax.f32 %v222, 0.0
  %v247 = vmax.f32 %v227, 0.0
  %v248 = vmax.f32 %v230, 0.0
  %v249 = vpack.c.bf16 %v234, %v233
  %v250 = vpack.c.bf16 %v236, %v235
  %v251 = vpack.c.bf16 %v238, %v237
  %v252 = vpack.c.bf16 %v240, %v239
  %v253 = vpack.c.bf16 %v242, %v241
  %v254 = vpack.c.bf16 %v244, %v243
  %v255 = vpack.c.bf16 %v246, %v245
  %v256 = vpack.c.bf16 %v248, %v247
  %v257 = vld [vmem:[%s4] sm:$0xf]
  %v258 = vld [vmem:[%s4 + $0x4] sm:$0xf]
  %v259 = vld [vmem:[%s4 + $0x8] sm:$0xf]
  %v260 = vld [vmem:[%s4 + $0xc] sm:$0xf]
  %v261 = vld [vmem:[%s4 + $0x10] sm:$0xf]
  %v262 = vld [vmem:[%s4 + $0x14] sm:$0xf]
  %v263 = vld [vmem:[%s4 + $0x18] sm:$0xf]
  %v264 = vld [vmem:[%s4 + $0x1c] sm:$0xf]
  %v265 = vld [vmem:[%s4 + $0x20] sm:$0xf]
  %v266 = vld [vmem:[%s4 + $0x24] sm:$0xf]
  %v267 = vld [vmem:[%s4 + $0x28] sm:$0xf]
  %v268 = vld [vmem:[%s4 + $0x2c] sm:$0xf]
  %v269 = vld [vmem:[%s4 + $0x30] sm:$0xf]
  %v270 = vld [vmem:[%s4 + $0x34] sm:$0xf]
  %v271 = vld [vmem:[%s4 + $0x38] sm:$0xf]
  %v272 = vld [vmem:[%s4 + $0x3c] sm:$0xf]
  %v273 = vld [vmem:[%s5] sm:$0x1]
  %v275 = vlaneseq
  %v276 = vshrl.u32 %v275, 7
  %v277 = vsub.s32 0, %v276
  %v278 = vrot.slane %v273, %v277
  %v296 = vunpack.c.l.b16 %v257
  %v297 = vunpack.c.l.b16 %v258
  %v298 = vunpack.c.l.b16 %v259
  %v299 = vunpack.c.l.b16 %v260
  %v300 = vunpack.c.l.b16 %v261
  %v301 = vunpack.c.l.b16 %v262
  %v302 = vunpack.c.l.b16 %v263
  %v303 = vunpack.c.l.b16 %v264
  %v304 = vunpack.c.l.b16 %v265
  %v305 = vunpack.c.l.b16 %v266
  %v306 = vunpack.c.l.b16 %v267
  %v307 = vunpack.c.l.b16 %v268
  %v308 = vunpack.c.l.b16 %v269
  %v309 = vunpack.c.l.b16 %v270
  %v310 = vunpack.c.l.b16 %v271
  %v311 = vunpack.c.l.b16 %v272
  %v312 = vpack.c.b16 %v297, %v296
  %v313 = vpack.c.b16 %v299, %v298
  %v314 = vpack.c.b16 %v301, %v300
  %v315 = vpack.c.b16 %v303, %v302
  %v316 = vpack.c.b16 %v305, %v304
  %v317 = vpack.c.b16 %v307, %v306
  %v318 = vpack.c.b16 %v309, %v308
  %v319 = vpack.c.b16 %v311, %v310
  %328 = vmatprep.subr.bf16.mxu0 0
  %329 = vmatpush1.bf16.msra.mxu0 %v319
  %330 = vmatprep.subr.bf16.mxu0 0
  %331 = vmatpush1.bf16.msra.mxu0 %v318
  %332 = vmatprep.subr.bf16.mxu0 0
  %333 = vmatpush1.bf16.msra.mxu0 %v317
  %334 = vmatprep.subr.bf16.mxu0 0
  %335 = vmatpush1.bf16.msra.mxu0 %v316
  %336 = vmatprep.subr.bf16.mxu0 0
  %337 = vmatpush1.bf16.msra.mxu0 %v315
  %338 = vmatprep.subr.bf16.mxu0 0
  %339 = vmatpush1.bf16.msra.mxu0 %v314
  %340 = vmatprep.subr.bf16.mxu0 0
  %341 = vmatpush1.bf16.msra.mxu0 %v313
  %342 = vmatprep.subr.bf16.mxu0 0
  %343 = vmatpush1.bf16.msra.mxu0 %v312
  %344 = vmatprep.subr.bf16.mxu0 0
  %345 = vmatpush2.bf16.msra.mxu0 0
  %346 = vmatprep.subr.bf16.mxu0 0
  %347 = vmatpush2.bf16.msra.mxu0 0
  %348 = vmatprep.subr.bf16.mxu0 0
  %349 = vmatpush2.bf16.msra.mxu0 0
  %350 = vmatprep.subr.bf16.mxu0 0
  %351 = vmatpush2.bf16.msra.mxu0 0
  %352 = vmatprep.subr.bf16.mxu0 0
  %353 = vmatpush2.bf16.msra.mxu0 0
  %354 = vmatprep.subr.bf16.mxu0 0
  %355 = vmatpush2.bf16.msra.mxu0 0
  %356 = vmatprep.subr.bf16.mxu0 0
  %357 = vmatpush2.bf16.msra.mxu0 0
  %358 = vmatprep.subr.bf16.mxu0 0
  %359 = vmatpush2.bf16.msra.mxu0 0
  %360 = vmatprep.mubr.bf16.mxu0 0
  %361 = vmatmul.mubr.bf16.gmra.mxu0 %v249
  %v362 = vpop.f32.mrf.mxu0
  %v363 = vadd.f32 %v278, %v362
  %v364 = vpop.f32.mrf.mxu0
  %v365 = vpop.f32.mrf.mxu0
  %v366 = vadd.f32 %v278, %v365
  %v367 = vpop.f32.mrf.mxu0
  %368 = vmatprep.mubr.bf16.mxu0 0
  %369 = vmatmul.mubr.bf16.gmra.mxu0 %v250
  %v370 = vpop.f32.mrf.mxu0
  %v371 = vadd.f32 %v278, %v370
  %v372 = vpop.f32.mrf.mxu0
  %v373 = vpop.f32.mrf.mxu0
  %v374 = vadd.f32 %v278, %v373
  %v375 = vpop.f32.mrf.mxu0
  %376 = vmatprep.mubr.bf16.mxu0 0
  %377 = vmatmul.mubr.bf16.gmra.mxu0 %v251
  %v378 = vpop.f32.mrf.mxu0
  %v379 = vadd.f32 %v278, %v378
  %v380 = vpop.f32.mrf.mxu0
  %v381 = vpop.f32.mrf.mxu0
  %v382 = vadd.f32 %v278, %v381
  %v383 = vpop.f32.mrf.mxu0
  %384 = vmatprep.mubr.bf16.mxu0 0
  %385 = vmatmul.mubr.bf16.gmra.mxu0 %v252
  %v386 = vpop.f32.mrf.mxu0
  %v387 = vadd.f32 %v278, %v386
  %v388 = vpop.f32.mrf.mxu0
  %v389 = vpop.f32.mrf.mxu0
  %v390 = vadd.f32 %v278, %v389
  %v391 = vpop.f32.mrf.mxu0
  %392 = vmatprep.mubr.bf16.mxu0 0
  %393 = vmatmul.mubr.bf16.gmra.mxu0 %v253
  %v394 = vpop.f32.mrf.mxu0
  %v395 = vadd.f32 %v278, %v394
  %v396 = vpop.f32.mrf.mxu0
  %v397 = vpop.f32.mrf.mxu0
  %v398 = vadd.f32 %v278, %v397
  %v399 = vpop.f32.mrf.mxu0
  %400 = vmatprep.mubr.bf16.mxu0 0
  %401 = vmatmul.mubr.bf16.gmra.mxu0 %v254
  %v402 = vpop.f32.mrf.mxu0
  %v403 = vadd.f32 %v278, %v402
  %v404 = vpop.f32.mrf.mxu0
  %v405 = vpop.f32.mrf.mxu0
  %v406 = vadd.f32 %v278, %v405
  %v407 = vpop.f32.mrf.mxu0
  %408 = vmatprep.mubr.bf16.mxu0 0
  %409 = vmatmul.mubr.bf16.gmra.mxu0 %v255
  %v410 = vpop.f32.mrf.mxu0
  %v411 = vadd.f32 %v278, %v410
  %v412 = vpop.f32.mrf.mxu0
  %v413 = vpop.f32.mrf.mxu0
  %v414 = vadd.f32 %v278, %v413
  %v415 = vpop.f32.mrf.mxu0
  %416 = vmatprep.mubr.bf16.mxu0 0
  %417 = vmatmul.mubr.bf16.gmra.mxu0 %v256
  %v418 = vpop.f32.mrf.mxu0
  %v419 = vadd.f32 %v278, %v418
  %v420 = vpop.f32.mrf.mxu0
  %v421 = vpop.f32.mrf.mxu0
  %v422 = vadd.f32 %v278, %v421
  %v423 = vpop.f32.mrf.mxu0
  %424 = vdwg.mxu0
  %v425 = vmax.f32 %v363, 0.0
  %v426 = vmax.f32 %v366, 0.0
  %v427 = vmax.f32 %v371, 0.0
  %v428 = vmax.f32 %v374, 0.0
  %v429 = vmax.f32 %v379, 0.0
  %v430 = vmax.f32 %v382, 0.0
  %v431 = vmax.f32 %v387, 0.0
  %v432 = vmax.f32 %v390, 0.0
  %v433 = vmax.f32 %v395, 0.0
  %v434 = vmax.f32 %v398, 0.0
  %v435 = vmax.f32 %v403, 0.0
  %v436 = vmax.f32 %v406, 0.0
  %v437 = vmax.f32 %v411, 0.0
  %v438 = vmax.f32 %v414, 0.0
  %v439 = vmax.f32 %v419, 0.0
  %v440 = vmax.f32 %v422, 0.0
  %v441 = vld [vmem:[%s1] sm:$0xff]
  %v442 = vld [vmem:[%s1 + $0x8] sm:$0xff]
  %v443 = vld [vmem:[%s1 + $0x10] sm:$0xff]
  %v444 = vld [vmem:[%s1 + $0x18] sm:$0xff]
  %v445 = vld [vmem:[%s1 + $0x20] sm:$0xff]
  %v446 = vld [vmem:[%s1 + $0x28] sm:$0xff]
  %v447 = vld [vmem:[%s1 + $0x30] sm:$0xff]
  %v448 = vld [vmem:[%s1 + $0x38] sm:$0xff]
  %v449 = vld [vmem:[%s1 + $0x40] sm:$0xff]
  %v450 = vld [vmem:[%s1 + $0x48] sm:$0xff]
  %v451 = vld [vmem:[%s1 + $0x50] sm:$0xff]
  %v452 = vld [vmem:[%s1 + $0x58] sm:$0xff]
  %v453 = vld [vmem:[%s1 + $0x60] sm:$0xff]
  %v454 = vld [vmem:[%s1 + $0x68] sm:$0xff]
  %v455 = vld [vmem:[%s1 + $0x70] sm:$0xff]
  %v456 = vld [vmem:[%s1 + $0x78] sm:$0xff]
  %vm457 = vcmp.gt.s32.totalorder %v441, 0
  %vm458 = vcmp.gt.s32.totalorder %v442, 0
  %vm459 = vcmp.gt.s32.totalorder %v443, 0
  %vm460 = vcmp.gt.s32.totalorder %v444, 0
  %vm461 = vcmp.gt.s32.totalorder %v445, 0
  %vm462 = vcmp.gt.s32.totalorder %v446, 0
  %vm463 = vcmp.gt.s32.totalorder %v447, 0
  %vm464 = vcmp.gt.s32.totalorder %v448, 0
  %vm465 = vcmp.gt.s32.totalorder %v449, 0
  %vm466 = vcmp.gt.s32.totalorder %v450, 0
  %vm467 = vcmp.gt.s32.totalorder %v451, 0
  %vm468 = vcmp.gt.s32.totalorder %v452, 0
  %vm469 = vcmp.gt.s32.totalorder %v453, 0
  %vm470 = vcmp.gt.s32.totalorder %v454, 0
  %vm471 = vcmp.gt.s32.totalorder %v455, 0
  %vm472 = vcmp.gt.s32.totalorder %v456, 0
  %v473 = vsel %vm457, 1, 0
  %v474 = vsel %vm458, 1, 0
  %v475 = vsel %vm459, 1, 0
  %v476 = vsel %vm460, 1, 0
  %v477 = vsel %vm461, 1, 0
  %v478 = vsel %vm462, 1, 0
  %v479 = vsel %vm463, 1, 0
  %v480 = vsel %vm464, 1, 0
  %v481 = vsel %vm465, 1, 0
  %v482 = vsel %vm466, 1, 0
  %v483 = vsel %vm467, 1, 0
  %v484 = vsel %vm468, 1, 0
  %v485 = vsel %vm469, 1, 0
  %v486 = vsel %vm470, 1, 0
  %v487 = vsel %vm471, 1, 0
  %v488 = vsel %vm472, 1, 0
  %v489 = vcvt.s32.f32 %v473
  %v490 = vcvt.s32.f32 %v474
  %v491 = vcvt.s32.f32 %v475
  %v492 = vcvt.s32.f32 %v476
  %v493 = vcvt.s32.f32 %v477
  %v494 = vcvt.s32.f32 %v478
  %v495 = vcvt.s32.f32 %v479
  %v496 = vcvt.s32.f32 %v480
  %v497 = vcvt.s32.f32 %v481
  %v498 = vcvt.s32.f32 %v482
  %v499 = vcvt.s32.f32 %v483
  %v500 = vcvt.s32.f32 %v484
  %v501 = vcvt.s32.f32 %v485
  %v502 = vcvt.s32.f32 %v486
  %v503 = vcvt.s32.f32 %v487
  %v504 = vcvt.s32.f32 %v488
  %vm505 = vcmp.lt.s32.totalorder %v441, 0
  %vm506 = vcmp.lt.s32.totalorder %v442, 0
  %vm507 = vcmp.lt.s32.totalorder %v443, 0
  %vm508 = vcmp.lt.s32.totalorder %v444, 0
  %vm509 = vcmp.lt.s32.totalorder %v445, 0
  %vm510 = vcmp.lt.s32.totalorder %v446, 0
  %vm511 = vcmp.lt.s32.totalorder %v447, 0
  %vm512 = vcmp.lt.s32.totalorder %v448, 0
  %vm513 = vcmp.lt.s32.totalorder %v449, 0
  %vm514 = vcmp.lt.s32.totalorder %v450, 0
  %vm515 = vcmp.lt.s32.totalorder %v451, 0
  %vm516 = vcmp.lt.s32.totalorder %v452, 0
  %vm517 = vcmp.lt.s32.totalorder %v453, 0
  %vm518 = vcmp.lt.s32.totalorder %v454, 0
  %vm519 = vcmp.lt.s32.totalorder %v455, 0
  %vm520 = vcmp.lt.s32.totalorder %v456, 0
  %v521 = vsel %vm505, 1, 0
  %v522 = vsel %vm506, 1, 0
  %v523 = vsel %vm507, 1, 0
  %v524 = vsel %vm508, 1, 0
  %v525 = vsel %vm509, 1, 0
  %v526 = vsel %vm510, 1, 0
  %v527 = vsel %vm511, 1, 0
  %v528 = vsel %vm512, 1, 0
  %v529 = vsel %vm513, 1, 0
  %v530 = vsel %vm514, 1, 0
  %v531 = vsel %vm515, 1, 0
  %v532 = vsel %vm516, 1, 0
  %v533 = vsel %vm517, 1, 0
  %v534 = vsel %vm518, 1, 0
  %v535 = vsel %vm519, 1, 0
  %v536 = vsel %vm520, 1, 0
  %v537 = vcvt.s32.f32 %v521
  %v538 = vcvt.s32.f32 %v522
  %v539 = vcvt.s32.f32 %v523
  %v540 = vcvt.s32.f32 %v524
  %v541 = vcvt.s32.f32 %v525
  %v542 = vcvt.s32.f32 %v526
  %v543 = vcvt.s32.f32 %v527
  %v544 = vcvt.s32.f32 %v528
  %v545 = vcvt.s32.f32 %v529
  %v546 = vcvt.s32.f32 %v530
  %v547 = vcvt.s32.f32 %v531
  %v548 = vcvt.s32.f32 %v532
  %v549 = vcvt.s32.f32 %v533
  %v550 = vcvt.s32.f32 %v534
  %v551 = vcvt.s32.f32 %v535
  %v552 = vcvt.s32.f32 %v536
  %v553 = vlaneseq
  %v554 = vand.u32 %v553, 127
  %vm555 = vcmp.lt.s32.totalorder %v554, 32
  %557 = vset.pattern.permute.xlu0 0
  %558 = vperm.xlu0 %557, %v489
  %v559 = vpop.permute.xlu0 %558
  %562 = vset.pattern.permute.xlu0 0
  %563 = vperm.xlu0 %562, %v490
  %v564 = vpop.permute.xlu0 %563
  %567 = vset.pattern.permute.xlu0 0
  %568 = vperm.xlu0 %567, %v491
  %v569 = vpop.permute.xlu0 %568
  %572 = vset.pattern.permute.xlu0 0
  %573 = vperm.xlu0 %572, %v492
  %v574 = vpop.permute.xlu0 %573
  %577 = vset.pattern.permute.xlu0 0
  %578 = vperm.xlu0 %577, %v493
  %v579 = vpop.permute.xlu0 %578
  %582 = vset.pattern.permute.xlu0 0
  %583 = vperm.xlu0 %582, %v494
  %v584 = vpop.permute.xlu0 %583
  %587 = vset.pattern.permute.xlu0 0
  %588 = vperm.xlu0 %587, %v495
  %v589 = vpop.permute.xlu0 %588
  %592 = vset.pattern.permute.xlu0 0
  %593 = vperm.xlu0 %592, %v496
  %v594 = vpop.permute.xlu0 %593
  %597 = vset.pattern.permute.xlu0 0
  %598 = vperm.xlu0 %597, %v497
  %v599 = vpop.permute.xlu0 %598
  %602 = vset.pattern.permute.xlu0 0
  %603 = vperm.xlu0 %602, %v498
  %v604 = vpop.permute.xlu0 %603
  %607 = vset.pattern.permute.xlu0 0
  %608 = vperm.xlu0 %607, %v499
  %v609 = vpop.permute.xlu0 %608
  %612 = vset.pattern.permute.xlu0 0
  %613 = vperm.xlu0 %612, %v500
  %v614 = vpop.permute.xlu0 %613
  %617 = vset.pattern.permute.xlu0 0
  %618 = vperm.xlu0 %617, %v501
  %v619 = vpop.permute.xlu0 %618
  %622 = vset.pattern.permute.xlu0 0
  %623 = vperm.xlu0 %622, %v502
  %v624 = vpop.permute.xlu0 %623
  %627 = vset.pattern.permute.xlu0 0
  %628 = vperm.xlu0 %627, %v503
  %v629 = vpop.permute.xlu0 %628
  %632 = vset.pattern.permute.xlu0 0
  %633 = vperm.xlu0 %632, %v504
  %v634 = vpop.permute.xlu0 %633
  %637 = vset.pattern.permute.xlu0 0
  %638 = vperm.xlu0 %637, %v537
  %v639 = vpop.permute.xlu0 %638
  %642 = vset.pattern.permute.xlu0 0
  %643 = vperm.xlu0 %642, %v538
  %v644 = vpop.permute.xlu0 %643
  %647 = vset.pattern.permute.xlu0 0
  %648 = vperm.xlu0 %647, %v539
  %v649 = vpop.permute.xlu0 %648
  %652 = vset.pattern.permute.xlu0 0
  %653 = vperm.xlu0 %652, %v540
  %v654 = vpop.permute.xlu0 %653
  %657 = vset.pattern.permute.xlu0 0
  %658 = vperm.xlu0 %657, %v541
  %v659 = vpop.permute.xlu0 %658
  %662 = vset.pattern.permute.xlu0 0
  %663 = vperm.xlu0 %662, %v542
  %v664 = vpop.permute.xlu0 %663
  %667 = vset.pattern.permute.xlu0 0
  %668 = vperm.xlu0 %667, %v543
  %v669 = vpop.permute.xlu0 %668
  %672 = vset.pattern.permute.xlu0 0
  %673 = vperm.xlu0 %672, %v544
  %v674 = vpop.permute.xlu0 %673
  %677 = vset.pattern.permute.xlu0 0
  %678 = vperm.xlu0 %677, %v545
  %v679 = vpop.permute.xlu0 %678
  %682 = vset.pattern.permute.xlu0 0
  %683 = vperm.xlu0 %682, %v546
  %v684 = vpop.permute.xlu0 %683
  %687 = vset.pattern.permute.xlu0 0
  %688 = vperm.xlu0 %687, %v547
  %v689 = vpop.permute.xlu0 %688
  %692 = vset.pattern.permute.xlu0 0
  %693 = vperm.xlu0 %692, %v548
  %v694 = vpop.permute.xlu0 %693
  %697 = vset.pattern.permute.xlu0 0
  %698 = vperm.xlu0 %697, %v549
  %v699 = vpop.permute.xlu0 %698
  %702 = vset.pattern.permute.xlu0 0
  %703 = vperm.xlu0 %702, %v550
  %v704 = vpop.permute.xlu0 %703
  %707 = vset.pattern.permute.xlu0 0
  %708 = vperm.xlu0 %707, %v551
  %v709 = vpop.permute.xlu0 %708
  %712 = vset.pattern.permute.xlu0 0
  %713 = vperm.xlu0 %712, %v552
  %v714 = vpop.permute.xlu0 %713
  %v716 = vsel %vm555, %v559, %v639
  %v717 = vsel %vm555, %v564, %v644
  %v718 = vsel %vm555, %v569, %v649
  %v719 = vsel %vm555, %v574, %v654
  %v720 = vsel %vm555, %v579, %v659
  %v721 = vsel %vm555, %v584, %v664
  %v722 = vsel %vm555, %v589, %v669
  %v723 = vsel %vm555, %v594, %v674
  %v724 = vsel %vm555, %v599, %v679
  %v725 = vsel %vm555, %v604, %v684
  %v726 = vsel %vm555, %v609, %v689
  %v727 = vsel %vm555, %v614, %v694
  %v728 = vsel %vm555, %v619, %v699
  %v729 = vsel %vm555, %v624, %v704
  %v730 = vsel %vm555, %v629, %v709
  %v731 = vsel %vm555, %v634, %v714
  %v732 = vmul.f32 %v425, %v716
  %v733 = vmul.f32 %v426, %v717
  %v734 = vmul.f32 %v427, %v718
  %v735 = vmul.f32 %v428, %v719
  %v736 = vmul.f32 %v429, %v720
  %v737 = vmul.f32 %v430, %v721
  %v738 = vmul.f32 %v431, %v722
  %v739 = vmul.f32 %v432, %v723
  %v740 = vmul.f32 %v433, %v724
  %v741 = vmul.f32 %v434, %v725
  %v742 = vmul.f32 %v435, %v726
  %v743 = vmul.f32 %v436, %v727
  %v744 = vmul.f32 %v437, %v728
  %v745 = vmul.f32 %v438, %v729
  %v746 = vmul.f32 %v439, %v730
  %v747 = vmul.f32 %v440, %v731
  %v748 = vpack.c.bf16 %v733, %v732
  %v749 = vpack.c.bf16 %v735, %v734
  %v750 = vpack.c.bf16 %v737, %v736
  %v751 = vpack.c.bf16 %v739, %v738
  %v752 = vpack.c.bf16 %v741, %v740
  %v753 = vpack.c.bf16 %v743, %v742
  %v754 = vpack.c.bf16 %v745, %v744
  %v755 = vpack.c.bf16 %v747, %v746
  %v764 = vunpack.c.l.b16 %v748
  %v765 = vunpack.c.h.b16 %v748
  %v766 = vunpack.c.l.b16 %v749
  %v767 = vunpack.c.h.b16 %v749
  %v768 = vunpack.c.l.b16 %v750
  %v769 = vunpack.c.h.b16 %v750
  %v770 = vunpack.c.l.b16 %v751
  %v771 = vunpack.c.h.b16 %v751
  %v772 = vunpack.c.l.b16 %v752
  %v773 = vunpack.c.h.b16 %v752
  %v774 = vunpack.c.l.b16 %v753
  %v775 = vunpack.c.h.b16 %v753
  %v776 = vunpack.c.l.b16 %v754
  %v777 = vunpack.c.h.b16 %v754
  %v778 = vunpack.c.l.b16 %v755
  %v779 = vunpack.c.h.b16 %v755
  %v780 = vpack.c.b16 %v764, %v764
  %v781 = vpack.c.b16 %v765, %v765
  %v782 = vpack.c.b16 %v766, %v766
  %v783 = vpack.c.b16 %v767, %v767
  %v784 = vpack.c.b16 %v768, %v768
  %v785 = vpack.c.b16 %v769, %v769
  %v786 = vpack.c.b16 %v770, %v770
  %v787 = vpack.c.b16 %v771, %v771
  %v788 = vpack.c.b16 %v772, %v772
  %v789 = vpack.c.b16 %v773, %v773
  %v790 = vpack.c.b16 %v774, %v774
  %v791 = vpack.c.b16 %v775, %v775
  %v792 = vpack.c.b16 %v776, %v776
  %v793 = vpack.c.b16 %v777, %v777
  %v794 = vpack.c.b16 %v778, %v778
  %v795 = vpack.c.b16 %v779, %v779
  %vm812 = vcmask 519168
  %813 = vst.msk [vmem:[%s6] sm:$0xf] %vm812, %v780
  %814 = vst.msk [vmem:[%s6 + $0x4] sm:$0xf] %vm812, %v781
  %815 = vst.msk [vmem:[%s6 + $0x8] sm:$0xf] %vm812, %v782
  %816 = vst.msk [vmem:[%s6 + $0xc] sm:$0xf] %vm812, %v783
  %817 = vst.msk [vmem:[%s6 + $0x10] sm:$0xf] %vm812, %v784
  %818 = vst.msk [vmem:[%s6 + $0x14] sm:$0xf] %vm812, %v785
  %819 = vst.msk [vmem:[%s6 + $0x18] sm:$0xf] %vm812, %v786
  %820 = vst.msk [vmem:[%s6 + $0x1c] sm:$0xf] %vm812, %v787
  %821 = vst.msk [vmem:[%s6 + $0x20] sm:$0xf] %vm812, %v788
  %822 = vst.msk [vmem:[%s6 + $0x24] sm:$0xf] %vm812, %v789
  %823 = vst.msk [vmem:[%s6 + $0x28] sm:$0xf] %vm812, %v790
  %824 = vst.msk [vmem:[%s6 + $0x2c] sm:$0xf] %vm812, %v791
  %825 = vst.msk [vmem:[%s6 + $0x30] sm:$0xf] %vm812, %v792
  %826 = vst.msk [vmem:[%s6 + $0x34] sm:$0xf] %vm812, %v793
  %827 = vst.msk [vmem:[%s6 + $0x38] sm:$0xf] %vm812, %v794
  %828 = vst.msk [vmem:[%s6 + $0x3c] sm:$0xf] %vm812, %v795
  // Predicated region
  $region26: #{_forward_impl.1} parent=0 // pred_check
    _
  $region27: #{_forward_impl.1} parent=0 // pred_check_branch
    %830 = sbr.rel (0) target = $region29
  $region28: #{_forward_impl.1} parent=0 // pred_region
    _
  $region29: #{_forward_impl.1} parent=0 // pred_fallthru
    _
  // Predicated region
  $region30: #{_forward_impl.1} parent=0 // pred_check
    _
  $region31: #{_forward_impl.1} parent=0 // pred_check_branch
    %832 = sbr.rel (0) target = $region33
  $region32: #{_forward_impl.1} parent=0 // pred_region
    _
  $region33: #{_forward_impl.1} parent=0 // pred_fallthru
    _

</llo_original>
